<compile_context>
chip_gen: v5e
topology: v5e:2x2
jax: 0.10.0
libtpu: 0.0.40
codegen_flags: <defaults>
</compile_context>

<pallas_src>
import functools

import jax
import jax.numpy as jnp
from jax.experimental import pallas as pl
from jax.experimental.pallas import tpu as pltpu


FEATURE_SCALAR = 0.04        # FeatureSimilarityLoss.get_scalar()
PARAM_SCALAR = 0.2           # ParameterSimilarityLoss.get_scalar()
_EPS = 1e-8                  # torch cosine similarity eps

FAST_PATH_BYTES = 4 * 1024 * 1024       # below this total footprint -> single resident block
WEIGHT_RESIDENT_BYTES = 2 * 1024 * 1024  # weight slab kept resident (exact block) below this
FEATURE_BLOCK_BYTES = 1024 * 1024        # target bytes per feature operand block per grid step
WEIGHT_BLOCK_ROWS = 2048                 # (2048,128) f32 = 1 MiB per tiled weight block


def _ceil_to(v, m):
    return -(-v // m) * m


def _cdiv(a, b):
    return -(-a // b)


# ----------------------------------------------------------------------------
# shared in-kernel math (keepdims / (N,1) shapes throughout the epilogue)
# ----------------------------------------------------------------------------

def _cross_entropy(x_f32, y_i32):
    m = jnp.max(x_f32, axis=-1, keepdims=True)
    xs = x_f32 - m
    lse = jnp.log(jnp.sum(jnp.exp(xs), axis=-1, keepdims=True))              # (N,1)
    col = jax.lax.broadcasted_iota(jnp.int32, x_f32.shape, 1)                # (N,C)
    tgt = jnp.sum(jnp.where(col == y_i32, xs, 0.0), axis=-1, keepdims=True)  # (N,1)
    # TODO(synk): torch's ignore_index (e.g. -100) has no equivalent here; labels assumed valid.
    return jnp.mean(lse - tgt)


def _cosine_embedding(dot, na2, nb2, match):
    na = jnp.maximum(jnp.sqrt(na2), _EPS)
    nb = jnp.maximum(jnp.sqrt(nb2), _EPS)
    cos = dot / (na * nb)                                                    # (N,1)
    per = jnp.where(match, 1.0 - cos, jnp.maximum(cos, 0.0))
    return jnp.mean(per)


# ----------------------------------------------------------------------------
# Fast path: single invocation, all operands resident, no padding copies
# ----------------------------------------------------------------------------

def _small_loss_kernel(x_ref, y_ref, plab_ref, a_ref, b_ref, w1_ref, w2_ref, o_ref):
    y = y_ref[...]
    ce = _cross_entropy(x_ref[...].astype(jnp.float32), y)

    a = a_ref[...].astype(jnp.float32)
    b = b_ref[...].astype(jnp.float32)
    dot = jnp.sum(a * b, axis=-1, keepdims=True)
    na2 = jnp.sum(a * a, axis=-1, keepdims=True)
    nb2 = jnp.sum(b * b, axis=-1, keepdims=True)
    cel = _cosine_embedding(dot, na2, nb2, plab_ref[...] == y)

    dw = w1_ref[...].astype(jnp.float32) - w2_ref[...].astype(jnp.float32)
    mse = jnp.mean(dw * dw)                                   # exact element count, no padding

    o_ref[...] = jnp.reshape(ce + FEATURE_SCALAR * cel + PARAM_SCALAR * mse, (1, 1))


# ----------------------------------------------------------------------------
# Tiled path: grid=(K,) over the reduction, wide VMEM accumulators
# ----------------------------------------------------------------------------

def _tiled_loss_kernel(x_ref, y_ref, plab_ref, a_ref, b_ref, w1_ref, w2_ref,
                       o_ref, dot_acc, na2_acc, nb2_acc, mse_acc,
                       *, weights_resident, mse_count):
    k = pl.program_id(0)
    nk = pl.num_programs(0)

    @pl.when(k == 0)
    def _init():
        dot_acc[...] = jnp.zeros_like(dot_acc)
        na2_acc[...] = jnp.zeros_like(na2_acc)
        nb2_acc[...] = jnp.zeros_like(nb2_acc)
        mse_acc[...] = jnp.zeros_like(mse_acc)

    # --- feature partial sums: accumulate lane-wise into (N,128) scratch ---
    # Only VPU mul/adds per step (no cross-lane XLU, no lane-width-1 stores);
    # zero-padded lanes contribute exactly 0.
    dsum = dot_acc[...]
    nasum = na2_acc[...]
    nbsum = nb2_acc[...]
    tile_d = a_ref.shape[1]
    for off in range(0, tile_d, 128):
        av = a_ref[:, off:off + 128].astype(jnp.float32)
        bv = b_ref[:, off:off + 128].astype(jnp.float32)
        dsum = dsum + av * bv
        nasum = nasum + av * av
        nbsum = nbsum + bv * bv
    dot_acc[...] = dsum
    na2_acc[...] = nasum
    nb2_acc[...] = nbsum

    # --- weight-MSE partial sums (only when the weight slab is tiled) ---
    if not weights_resident:
        dw = w1_ref[...].astype(jnp.float32) - w2_ref[...].astype(jnp.float32)
        d2 = dw * dw                                          # (rw, 128), rw % 8 == 0
        msum = mse_acc[...]
        for r0 in range(0, d2.shape[0], 8):
            msum = msum + d2[r0:r0 + 8, :]
        mse_acc[...] = msum

    @pl.when(k == nk - 1)
    def _finalize():
        y = y_ref[...]
        ce = _cross_entropy(x_ref[...].astype(jnp.float32), y)

        # single cross-lane reduction of the wide accumulators
        dot = jnp.sum(dot_acc[...], axis=-1, keepdims=True)
        na2 = jnp.sum(na2_acc[...], axis=-1, keepdims=True)
        nb2 = jnp.sum(nb2_acc[...], axis=-1, keepdims=True)
        cel = _cosine_embedding(dot, na2, nb2, plab_ref[...] == y)

        if weights_resident:
            dw = w1_ref[...].astype(jnp.float32) - w2_ref[...].astype(jnp.float32)
            mse = jnp.mean(dw * dw)                            # exact, unpadded slab
        else:
            mse = jnp.sum(mse_acc[...]) * jnp.float32(1.0 / mse_count)

        o_ref[...] = jnp.reshape(ce + FEATURE_SCALAR * cel + PARAM_SCALAR * mse, (1, 1))


# ----------------------------------------------------------------------------
# ParameterSimilarityLoss forward (layout plumbing in plain JAX)
# ----------------------------------------------------------------------------
# TODO(synk): the module's Python-side bookkeeping (common.TRAIN flag, feature dict
# traversal, pairing of same-shape conv.weight params) has no Pallas equivalent;
# this implements one feature pair + one weight pair per call.

@functools.partial(jax.jit, static_argnames=(
    "fast_path_bytes", "weight_resident_bytes", "feature_block_bytes"))
def parameter_similarity_loss(x, y, prev_feature, cur_feature, prev_label,
                              conv_w1, conv_w2, *,
                              fast_path_bytes=FAST_PATH_BYTES,
                              weight_resident_bytes=WEIGHT_RESIDENT_BYTES,
                              feature_block_bytes=FEATURE_BLOCK_BYTES):
    n, c = x.shape
    y2 = y.astype(jnp.int32).reshape(n, 1)
    plab2 = prev_label.astype(jnp.int32).reshape(n, 1)

    a = prev_feature.reshape(n, -1)
    b = cur_feature.reshape(n, -1)
    d = a.shape[1]
    co = conv_w1.shape[0]
    w1 = conv_w1.reshape(co, -1)
    w2 = conv_w2.reshape(co, -1)
    ew = w1.size

    # ---------- small-problem fast path: one block, no grid, no pads ----------
    resident_bytes = 4 * (n * c + 2 * n + 2 * n * d + 2 * ew)
    if resident_bytes <= fast_path_bytes:
        out = pl.pallas_call(
            _small_loss_kernel,
            out_shape=jax.ShapeDtypeStruct((1, 1), jnp.float32),
        )(x, y2, plab2, a, b, w1, w2)
        return out[0, 0]

    # ---------- tiled path ----------
    # Feature tiles: adaptive, lane-dense, >= 2048 lanes and ~feature_block_bytes per operand.
    target_tile_d = max(2048, _ceil_to(_cdiv(feature_block_bytes, 4 * n), 128))
    feat_steps = max(1, _cdiv(d, target_tile_d))

    # Weight handling is decoupled from the feature grid.
    weights_resident = ew * 4 <= weight_resident_bytes
    if weights_resident:
        w_steps = 1
    else:
        w_rows = _cdiv(ew, 128)
        w_steps = max(1, _cdiv(w_rows, WEIGHT_BLOCK_ROWS))

    k_steps = max(feat_steps, w_steps)

    # Spread the feature reduction evenly over k_steps; pad only if the split is ragged.
    tile_d = _ceil_to(_cdiv(d, k_steps), 128)
    d_pad = k_steps * tile_d
    if d_pad != d:
        a = jnp.pad(a, ((0, 0), (0, d_pad - d)))
        b = jnp.pad(b, ((0, 0), (0, d_pad - d)))

    if weights_resident:
        w1_in, w2_in = w1, w2                      # exact (Co, rest) slab, no flatten/pad copy
        w_shape = (co, w1.shape[1])
        w_index = lambda k: (0, 0)
        rw = 0
    else:
        w_rows = _cdiv(ew, 128)
        rw = _ceil_to(_cdiv(w_rows, k_steps), 8)
        rows_pad = k_steps * rw
        pad_elems = rows_pad * 128 - ew
        w1_flat = conv_w1.reshape(-1)
        w2_flat = conv_w2.reshape(-1)
        if pad_elems:
            w1_flat = jnp.pad(w1_flat, (0, pad_elems))
            w2_flat = jnp.pad(w2_flat, (0, pad_elems))
        w1_in = w1_flat.reshape(rows_pad, 128)
        w2_in = w2_flat.reshape(rows_pad, 128)
        w_shape = (rw, 128)
        w_index = lambda k: (k, 0)

    kernel = functools.partial(_tiled_loss_kernel,
                               weights_resident=weights_resident,
                               mse_count=float(ew))

    # VMEM budget derived from actual blocks (safe for v7x's 64 MiB physical VMEM).
    feat_block = n * tile_d * a.dtype.itemsize
    if weights_resident:
        w_bytes = 2 * co * w1.shape[1] * w1.dtype.itemsize
    else:
        w_bytes = 2 * 2 * rw * 128 * w1_in.dtype.itemsize
    vmem_est = (2 * 2 * feat_block + w_bytes + 4 * (n * c + 2 * n)
                + 4 * (3 * n * 128 + 8 * 128) + 16)
    vmem_limit = int(min(96 * 1024 * 1024, max(32 * 1024 * 1024, 2 * vmem_est)))

    bytes_accessed = int(x.size * x.dtype.itemsize + 2 * n * 4
                         + a.size * a.dtype.itemsize + b.size * b.dtype.itemsize
                         + w1_in.size * w1_in.dtype.itemsize
                         + w2_in.size * w2_in.dtype.itemsize + 4)
    cost = pl.CostEstimate(
        flops=int(6 * a.size + 3 * ew + 8 * n * c),
        transcendentals=int(n * c + 3 * n),
        bytes_accessed=bytes_accessed)

    out = pl.pallas_call(
        kernel,
        out_shape=jax.ShapeDtypeStruct((1, 1), jnp.float32),
        grid=(k_steps,),
        in_specs=[
            pl.BlockSpec((n, c), lambda k: (0, 0)),        # logits (resident)
            pl.BlockSpec((n, 1), lambda k: (0, 0)),        # current labels
            pl.BlockSpec((n, 1), lambda k: (0, 0)),        # previous labels
            pl.BlockSpec((n, tile_d), lambda k: (0, k)),   # prev feature tile
            pl.BlockSpec((n, tile_d), lambda k: (0, k)),   # cur feature tile
            pl.BlockSpec(w_shape, w_index),                # conv w1 (resident or tiled)
            pl.BlockSpec(w_shape, w_index),                # conv w2 (resident or tiled)
        ],
        out_specs=pl.BlockSpec((1, 1), lambda k: (0, 0)),
        scratch_shapes=[
            pltpu.VMEM((n, 128), jnp.float32),   # sum(a*b)   per row, lane-wide
            pltpu.VMEM((n, 128), jnp.float32),   # ||a||^2    per row, lane-wide
            pltpu.VMEM((n, 128), jnp.float32),   # ||b||^2    per row, lane-wide
            pltpu.VMEM((8, 128), jnp.float32),   # sum((w1-w2)^2), sublane-wide
        ],
        compiler_params=pltpu.CompilerParams(
            dimension_semantics=("arbitrary",),
            vmem_limit_bytes=vmem_limit),
        cost_estimate=cost,
    )(x, y2, plab2, a, b, w1_in, w2_in)
    return out[0, 0]


# ----------------------------------------------------------------------------
# Pure-JAX reference + driver
# ----------------------------------------------------------------------------

def _ref_loss(x, y, prev_feature, cur_feature, prev_label, conv_w1, conv_w2):
    n = x.shape[0]
    xf = x.astype(jnp.float32)
    lse = jax.nn.logsumexp(xf, axis=-1)
    ce = jnp.mean(lse - xf[jnp.arange(n), y])
    af = prev_feature.reshape(n, -1).astype(jnp.float32)
    bf = cur_feature.reshape(n, -1).astype(jnp.float32)
    na = jnp.maximum(jnp.linalg.norm(af, axis=-1), _EPS)
    nb = jnp.maximum(jnp.linalg.norm(bf, axis=-1), _EPS)
    cos = jnp.sum(af * bf, axis=-1) / (na * nb)
    cel = jnp.mean(jnp.where(prev_label == y, 1.0 - cos, jnp.maximum(cos, 0.0)))
    dw = conv_w1.astype(jnp.float32) - conv_w2.astype(jnp.float32)
    mse = jnp.mean(dw * dw)
    return ce + FEATURE_SCALAR * cel + PARAM_SCALAR * mse


if __name__ == "__main__":
    key = jax.random.PRNGKey(0)

    def make_case(k, n, c, feat_shape, conv_shape):
        ks = jax.random.split(k, 7)
        x = jax.random.normal(ks[0], (n, c), dtype=jnp.float32)
        y = jax.random.randint(ks[1], (n,), 0, c, dtype=jnp.int32)
        plab = jax.random.randint(ks[2], (n,), 0, c, dtype=jnp.int32)
        pf = jax.random.normal(ks[3], feat_shape, dtype=jnp.float32)
        cf = jax.random.normal(ks[4], feat_shape, dtype=jnp.float32)
        w1 = jax.random.normal(ks[5], conv_shape, dtype=jnp.float32) * 0.1
        w2 = jax.random.normal(ks[6], conv_shape, dtype=jnp.float32) * 0.1
        return (x, y, pf, cf, plab, w1, w2)

    k1, k2 = jax.random.split(key)

    # 1) small spec-sized case -> single-block fast path (all resident, no grid)
    case1 = make_case(k1, 8, 10, (8, 4, 16, 16), (8, 4, 3, 3))
    loss1 = jax.block_until_ready(parameter_similarity_loss(*case1))
    ref1 = _ref_loss(*case1)
    assert jnp.allclose(loss1, ref1, rtol=2e-5, atol=2e-5), (loss1, ref1)

    # 2) moderate case, forced onto the tiled path (4 feature tiles, resident weight slab)
    case2 = make_case(k2, 8, 10, (8, 16, 32, 32), (32, 16, 3, 3))
    loss2 = jax.block_until_ready(parameter_similarity_loss(
        *case2, fast_path_bytes=0, feature_block_bytes=128 * 1024))
    ref2 = _ref_loss(*case2)
    assert jnp.allclose(loss2, ref2, rtol=2e-5, atol=2e-5), (loss2, ref2)

    # 3) same inputs with the weight reduction tiled over the grid as well
    loss3 = jax.block_until_ready(parameter_similarity_loss(
        *case2, fast_path_bytes=0, feature_block_bytes=128 * 1024,
        weight_resident_bytes=0))
    assert jnp.allclose(loss3, ref2, rtol=2e-5, atol=2e-5), (loss3, ref2)

    print("KERNEL_OK")
</pallas_src>

<mosaic_0001>
module attributes {stable_mosaic.version = 11 : i64} {
  func.func @_small_loss_kernel(%arg0: memref<8x10xf32, #tpu.memory_space<vmem>>, %arg1: memref<8x1xi32, #tpu.memory_space<vmem>>, %arg2: memref<8x1xi32, #tpu.memory_space<vmem>>, %arg3: memref<8x1024xf32, #tpu.memory_space<vmem>>, %arg4: memref<8x1024xf32, #tpu.memory_space<vmem>>, %arg5: memref<8x36xf32, #tpu.memory_space<vmem>>, %arg6: memref<8x36xf32, #tpu.memory_space<vmem>>, %arg7: memref<1x1xf32, #tpu.memory_space<vmem>>) attributes {dimension_semantics = [], scalar_prefetch = 0 : i64, scratch_operands = 0 : i64, tpu.core_type = #tpu.core_type<tc>} {
    %c0 = arith.constant 0 : index
    %c0_0 = arith.constant 0 : index
    %0 = vector.load %arg1[%c0, %c0_0] : memref<8x1xi32, #tpu.memory_space<vmem>>, vector<8x1xi32>
    %c0_1 = arith.constant 0 : index
    %c0_2 = arith.constant 0 : index
    %1 = vector.load %arg0[%c0_1, %c0_2] : memref<8x10xf32, #tpu.memory_space<vmem>>, vector<8x10xf32>
    %cst = arith.constant dense<0xFF800000> : vector<8xf32>
    %2 = vector.multi_reduction <maximumf>, %1, %cst [1] : vector<8x10xf32> to vector<8xf32>
    %3 = vector.shape_cast %2 : vector<8xf32> to vector<8x1xf32>
    %4 = vector.broadcast %3 : vector<8x1xf32> to vector<8x10xf32>
    %5 = arith.subf %1, %4 : vector<8x10xf32>
    %6 = math.exp %5 : vector<8x10xf32>
    %cst_3 = arith.constant dense<0.000000e+00> : vector<8xf32>
    %7 = vector.multi_reduction <add>, %6, %cst_3 [1] : vector<8x10xf32> to vector<8xf32>
    %8 = vector.shape_cast %7 : vector<8xf32> to vector<8x1xf32>
    %9 = math.log %8 : vector<8x1xf32>
    %10 = tpu.iota {dimensions = array<i32: 1>} : vector<8x10xi32>
    %11 = vector.broadcast %0 : vector<8x1xi32> to vector<8x10xi32>
    %12 = arith.cmpi eq, %10, %11 : vector<8x10xi32>
    %cst_4 = arith.constant 0.000000e+00 : f32
    %13 = vector.broadcast %cst_4 : f32 to vector<8x10xf32>
    %14 = arith.select %12, %5, %13 : vector<8x10xi1>, vector<8x10xf32>
    %cst_5 = arith.constant dense<0.000000e+00> : vector<8xf32>
    %15 = vector.multi_reduction <add>, %14, %cst_5 [1] : vector<8x10xf32> to vector<8xf32>
    %16 = vector.shape_cast %15 : vector<8xf32> to vector<8x1xf32>
    %17 = arith.subf %9, %16 : vector<8x1xf32>
    %18 = vector.shape_cast %17 : vector<8x1xf32> to vector<1x8x1xf32>
    %cst_6 = arith.constant dense<0.000000e+00> : vector<1xf32>
    %19 = vector.multi_reduction <add>, %18, %cst_6 [1, 2] : vector<1x8x1xf32> to vector<1xf32>
    %20 = vector.shape_cast %19 : vector<1xf32> to vector<1x1x1xf32>
    %21 = vector.extract %20[0, 0, 0] : f32 from vector<1x1x1xf32>
    %cst_7 = arith.constant 8.000000e+00 : f32
    %22 = arith.divf %21, %cst_7 : f32
    %c0_8 = arith.constant 0 : index
    %c0_9 = arith.constant 0 : index
    %23 = vector.load %arg3[%c0_8, %c0_9] : memref<8x1024xf32, #tpu.memory_space<vmem>>, vector<8x1024xf32>
    %c0_10 = arith.constant 0 : index
    %c0_11 = arith.constant 0 : index
    %24 = vector.load %arg4[%c0_10, %c0_11] : memref<8x1024xf32, #tpu.memory_space<vmem>>, vector<8x1024xf32>
    %25 = arith.mulf %23, %24 : vector<8x1024xf32>
    %cst_12 = arith.constant dense<0.000000e+00> : vector<8xf32>
    %26 = vector.multi_reduction <add>, %25, %cst_12 [1] : vector<8x1024xf32> to vector<8xf32>
    %27 = vector.shape_cast %26 : vector<8xf32> to vector<8x1xf32>
    %28 = arith.mulf %23, %23 : vector<8x1024xf32>
    %cst_13 = arith.constant dense<0.000000e+00> : vector<8xf32>
    %29 = vector.multi_reduction <add>, %28, %cst_13 [1] : vector<8x1024xf32> to vector<8xf32>
    %30 = vector.shape_cast %29 : vector<8xf32> to vector<8x1xf32>
    %31 = arith.mulf %24, %24 : vector<8x1024xf32>
    %cst_14 = arith.constant dense<0.000000e+00> : vector<8xf32>
    %32 = vector.multi_reduction <add>, %31, %cst_14 [1] : vector<8x1024xf32> to vector<8xf32>
    %33 = vector.shape_cast %32 : vector<8xf32> to vector<8x1xf32>
    %c0_15 = arith.constant 0 : index
    %c0_16 = arith.constant 0 : index
    %34 = vector.load %arg2[%c0_15, %c0_16] : memref<8x1xi32, #tpu.memory_space<vmem>>, vector<8x1xi32>
    %35 = arith.cmpi eq, %34, %0 : vector<8x1xi32>
    %36 = math.sqrt %30 : vector<8x1xf32>
    %cst_17 = arith.constant 9.99999993E-9 : f32
    %37 = vector.broadcast %cst_17 : f32 to vector<8x1xf32>
    %38 = arith.maximumf %36, %37 : vector<8x1xf32>
    %39 = math.sqrt %33 : vector<8x1xf32>
    %cst_18 = arith.constant 9.99999993E-9 : f32
    %40 = vector.broadcast %cst_18 : f32 to vector<8x1xf32>
    %41 = arith.maximumf %39, %40 : vector<8x1xf32>
    %42 = arith.mulf %38, %41 : vector<8x1xf32>
    %43 = arith.divf %27, %42 : vector<8x1xf32>
    %cst_19 = arith.constant 1.000000e+00 : f32
    %44 = vector.broadcast %cst_19 : f32 to vector<8x1xf32>
    %45 = arith.subf %44, %43 : vector<8x1xf32>
    %cst_20 = arith.constant 0.000000e+00 : f32
    %46 = vector.broadcast %cst_20 : f32 to vector<8x1xf32>
    %47 = arith.maximumf %43, %46 : vector<8x1xf32>
    %48 = arith.select %35, %45, %47 : vector<8x1xi1>, vector<8x1xf32>
    %49 = vector.shape_cast %48 : vector<8x1xf32> to vector<1x8x1xf32>
    %cst_21 = arith.constant dense<0.000000e+00> : vector<1xf32>
    %50 = vector.multi_reduction <add>, %49, %cst_21 [1, 2] : vector<1x8x1xf32> to vector<1xf32>
    %51 = vector.shape_cast %50 : vector<1xf32> to vector<1x1x1xf32>
    %52 = vector.extract %51[0, 0, 0] : f32 from vector<1x1x1xf32>
    %cst_22 = arith.constant 8.000000e+00 : f32
    %53 = arith.divf %52, %cst_22 : f32
    %c0_23 = arith.constant 0 : index
    %c0_24 = arith.constant 0 : index
    %54 = vector.load %arg5[%c0_23, %c0_24] : memref<8x36xf32, #tpu.memory_space<vmem>>, vector<8x36xf32>
    %c0_25 = arith.constant 0 : index
    %c0_26 = arith.constant 0 : index
    %55 = vector.load %arg6[%c0_25, %c0_26] : memref<8x36xf32, #tpu.memory_space<vmem>>, vector<8x36xf32>
    %56 = arith.subf %54, %55 : vector<8x36xf32>
    %57 = arith.mulf %56, %56 : vector<8x36xf32>
    %58 = vector.shape_cast %57 : vector<8x36xf32> to vector<1x8x36xf32>
    %cst_27 = arith.constant dense<0.000000e+00> : vector<1xf32>
    %59 = vector.multi_reduction <add>, %58, %cst_27 [1, 2] : vector<1x8x36xf32> to vector<1xf32>
    %60 = vector.shape_cast %59 : vector<1xf32> to vector<1x1x1xf32>
    %61 = vector.extract %60[0, 0, 0] : f32 from vector<1x1x1xf32>
    %cst_28 = arith.constant 2.880000e+02 : f32
    %62 = arith.divf %61, %cst_28 : f32
    %cst_29 = arith.constant 4.000000e-02 : f32
    %63 = arith.mulf %cst_29, %53 : f32
    %64 = arith.addf %22, %63 : f32
    %cst_30 = arith.constant 2.000000e-01 : f32
    %65 = arith.mulf %cst_30, %62 : f32
    %66 = arith.addf %64, %65 : f32
    %67 = vector.broadcast %66 : f32 to vector<1x1xf32>
    %c0_31 = arith.constant 0 : index
    %c0_32 = arith.constant 0 : index
    %68 = vector.load %arg7[%c0_31, %c0_32] : memref<1x1xf32, #tpu.memory_space<vmem>>, vector<1x1xf32>
    tpu.vector_store %arg7[%c0_31, %c0_32], %67 {strides = array<i32>} : memref<1x1xf32, #tpu.memory_space<vmem>>, vector<1x1xf32>,
    return
  }
}

</mosaic_0001>

<llo_original>
// kernel: parameter_similarity_loss.1
$region0: #{parameter_similarity_loss.1}
  #allocation0 [shape = 'u32[]', space=smem, size = 0x4, offset = 0x4, fixed_abs, tag = 'smem constant byte address 0x4 - core index']
  #allocation1 [shape = 'u32[72,128]{1,0:T(1,128)}', space=vmem, size = 0x9000, scoped, tag = 'internal scratch']
  %s0 = inlined_call_operand.vmem [shape: f32[8,10], index: 0, kind: input, shape index: {}]
  %s1 = inlined_call_operand.vmem [shape: s32[8,1], index: 1, kind: input, shape index: {}]
  %s2 = inlined_call_operand.vmem [shape: s32[8,1], index: 2, kind: input, shape index: {}]
  %s3 = inlined_call_operand.vmem [shape: f32[8,1024], index: 3, kind: input, shape index: {}]
  %s4 = inlined_call_operand.vmem [shape: f32[8,1024], index: 4, kind: input, shape index: {}]
  %s5 = inlined_call_operand.vmem [shape: f32[8,36], index: 5, kind: input, shape index: {}]
  %s6 = inlined_call_operand.vmem [shape: f32[8,36], index: 6, kind: input, shape index: {}]
  %s7 = inlined_call_operand.hbm [shape: f32[1,1], index: 7, kind: output, shape index: {}]
  %s8 = sld [smem:[#allocation0]]
  $region38: #{parameter_similarity_loss.1} parent=0
    _
  %s10 = ssub.s32 1, %s8
  %s11 = scalar_select 0, %s10, %s8
  $region1: #{parameter_similarity_loss.1} parent=0
    #allocation2 [shape = 'u8[512]{0}', space=vmem, size = 0x400, scoped, tag = 'output window, operand 0, single buffered']
    #allocation3 [shape = 's32[1]{0}', space=sflag, size = 0x4, scoped, tag = 'scoped memory for parameter_similarity_loss.1']
    %12 = vsyncpa [#allocation3], 0
    // Predicated region
    $region2: #{parameter_similarity_loss.1} parent=1 // pred_check
      _
    $region3: #{parameter_similarity_loss.1} parent=1 // pred_check_branch
      %14 = sbr.rel (0) target = $region5
    $region4: #{parameter_similarity_loss.1} parent=1 // pred_region
      _
    $region5: #{parameter_similarity_loss.1} parent=1 // pred_fallthru
      _
    // Predicated region
    $region6: #{parameter_similarity_loss.1} parent=1 // pred_check
      _
    $region7: #{parameter_similarity_loss.1} parent=1 // pred_check_branch
      %16 = sbr.rel (0) target = $region9
    $region8: #{parameter_similarity_loss.1} parent=1 // pred_region
      _
    $region9: #{parameter_similarity_loss.1} parent=1 // pred_fallthru
      _
    // Predicated region
    $region10: #{parameter_similarity_loss.1} parent=1 // pred_check
      _
    $region11: #{parameter_similarity_loss.1} parent=1 // pred_check_branch
      %18 = sbr.rel (0) target = $region13
    $region12: #{parameter_similarity_loss.1} parent=1 // pred_region
      _
    $region13: #{parameter_similarity_loss.1} parent=1 // pred_fallthru
      _
    // Predicated region
    $region14: #{parameter_similarity_loss.1} parent=1 // pred_check
      _
    $region15: #{parameter_similarity_loss.1} parent=1 // pred_check_branch
      %20 = sbr.rel (0) target = $region17
    $region16: #{parameter_similarity_loss.1} parent=1 // pred_region
      _
    $region17: #{parameter_similarity_loss.1} parent=1 // pred_fallthru
      _
    // Predicated region
    $region18: #{parameter_similarity_loss.1} parent=1 // pred_check
      _
    $region19: #{parameter_similarity_loss.1} parent=1 // pred_check_branch
      %22 = sbr.rel (0) target = $region21
    $region20: #{parameter_similarity_loss.1} parent=1 // pred_region
      _
    $region21: #{parameter_similarity_loss.1} parent=1 // pred_fallthru
      _
    // Predicated region
    $region22: #{parameter_similarity_loss.1} parent=1 // pred_check
      _
    $region23: #{parameter_similarity_loss.1} parent=1 // pred_check_branch
      %24 = sbr.rel (0) target = $region25
    $region24: #{parameter_similarity_loss.1} parent=1 // pred_region
      _
    $region25: #{parameter_similarity_loss.1} parent=1 // pred_fallthru
      _
    // Predicated region
    $region26: #{parameter_similarity_loss.1} parent=1 // pred_check
      _
    $region27: #{parameter_similarity_loss.1} parent=1 // pred_check_branch
      %26 = sbr.rel (0) target = $region29
    $region28: #{parameter_similarity_loss.1} parent=1 // pred_region
      _
    $region29: #{parameter_similarity_loss.1} parent=1 // pred_fallthru
      _
    %v27 = vld [vmem:[%s1] sm:$0xff]
    %v28 = vld [vmem:[%s0] sm:$0xff]
    %vm29 = vcmask 80896
    %v30 = vsel %vm29, %v28, -inf
    %31 = vmax.xlane.f32.xlu0 %v30
    %v32 = vpop.xlane.xlu0 %31
    %v33 = vsub.f32 %v28, %v32
    %v34 = vmul.f32 %v33, 1.442695
    %v35 = vpow.pop %v34
    %v36 = vsel %vm29, %v35, 0.0
    %37 = vadd.xlane.f32.xlu0 %v36
    %v38 = vpop.xlane.xlu0 %37
    %v39 = vlog2.pop %v38
    %v40 = vmul.f32 %v39, 0.6931472
    %v41 = vlaneseq
    %v42 = vand.u32 %v41, 127
    %43 = vset.pattern.permute.xlu0 0
    %44 = vperm.xlu0 %43, %v27
    %v45 = vpop.permute.xlu0 %44
    %vm46 = vcmp.eq.s32.totalorder %v42, %v45
    %v47 = vsel %vm46, %v33, 0.0
    %v48 = vsel %vm29, %v47, 0.0
    %49 = vadd.xlane.f32.xlu0 %v48
    %v50 = vpop.xlane.xlu0 %49
    %v51 = vsub.f32 %v40, %v50
    %vm52 = vcmask 7168
    %v53 = vsel %vm52, %v51, 0.0
    %54 = vadd.xlane.f32.xlu0 %v53
    %v55 = vpop.xlane.xlu0 %54
    %v56 = vrot.slane %v55, 4
    %v57 = vadd.f32 %v55, %v56
    %v58 = vrot.slane %v57, 2
    %v59 = vadd.f32 %v57, %v58
    %v60 = vrot.slane %v59, 1
    %v61 = vadd.f32 %v59, %v60
    %s62 = vtos %v61
    %v63 = vrcp.pop 8.0
    %v64 = vmul.f32 8.0, %v63
    %v65 = vsub.f32 1.0, %v64
    %v66 = vmul.f32 %v63, %v65
    %v67 = vadd.f32 %v63, %v66
    %vm68 = vweird.f32 %v63
    %v69 = vsel %vm68, %v63, %v67
    %s70 = vtos %v69
    %s71 = smul.f32 %s62, %s70
    %v72 = vld [vmem:[%s3] sm:$0xff]
    %v73 = vld [vmem:[%s3 + $0x8] sm:$0xff]
    %v74 = vld [vmem:[%s3 + $0x10] sm:$0xff]
    %v75 = vld [vmem:[%s3 + $0x18] sm:$0xff]
    %v76 = vld [vmem:[%s3 + $0x20] sm:$0xff]
    %v77 = vld [vmem:[%s3 + $0x28] sm:$0xff]
    %v78 = vld [vmem:[%s3 + $0x30] sm:$0xff]
    %v79 = vld [vmem:[%s3 + $0x38] sm:$0xff]
    %v80 = vld [vmem:[%s4] sm:$0xff]
    %v81 = vld [vmem:[%s4 + $0x8] sm:$0xff]
    %v82 = vld [vmem:[%s4 + $0x10] sm:$0xff]
    %v83 = vld [vmem:[%s4 + $0x18] sm:$0xff]
    %v84 = vld [vmem:[%s4 + $0x20] sm:$0xff]
    %v85 = vld [vmem:[%s4 + $0x28] sm:$0xff]
    %v86 = vld [vmem:[%s4 + $0x30] sm:$0xff]
    %v87 = vld [vmem:[%s4 + $0x38] sm:$0xff]
    %v88 = vmul.f32 %v72, %v80
    %v89 = vmul.f32 %v73, %v81
    %v90 = vmul.f32 %v74, %v82
    %v91 = vmul.f32 %v75, %v83
    %v92 = vmul.f32 %v76, %v84
    %v93 = vmul.f32 %v77, %v85
    %v94 = vmul.f32 %v78, %v86
    %v95 = vmul.f32 %v79, %v87
    %v96 = vadd.f32 %v88, %v89
    %v97 = vadd.f32 %v96, %v90
    %v98 = vadd.f32 %v97, %v91
    %v99 = vadd.f32 %v98, %v92
    %v100 = vadd.f32 %v99, %v93
    %v101 = vadd.f32 %v100, %v94
    %v102 = vadd.f32 %v101, %v95
    %103 = vadd.xlane.f32.xlu0 %v102
    %v104 = vpop.xlane.xlu0 %103
    %v105 = vmul.f32 %v72, %v72
    %v106 = vmul.f32 %v73, %v73
    %v107 = vmul.f32 %v74, %v74
    %v108 = vmul.f32 %v75, %v75
    %v109 = vmul.f32 %v76, %v76
    %v110 = vmul.f32 %v77, %v77
    %v111 = vmul.f32 %v78, %v78
    %v112 = vmul.f32 %v79, %v79
    %v113 = vadd.f32 %v105, %v106
    %v114 = vadd.f32 %v113, %v107
    %v115 = vadd.f32 %v114, %v108
    %v116 = vadd.f32 %v115, %v109
    %v117 = vadd.f32 %v116, %v110
    %v118 = vadd.f32 %v117, %v111
    %v119 = vadd.f32 %v118, %v112
    %120 = vadd.xlane.f32.xlu0 %v119
    %v121 = vpop.xlane.xlu0 %120
    %v122 = vmul.f32 %v80, %v80
    %v123 = vmul.f32 %v81, %v81
    %v124 = vmul.f32 %v82, %v82
    %v125 = vmul.f32 %v83, %v83
    %v126 = vmul.f32 %v84, %v84
    %v127 = vmul.f32 %v85, %v85
    %v128 = vmul.f32 %v86, %v86
    %v129 = vmul.f32 %v87, %v87
    %v130 = vadd.f32 %v122, %v123
    %v131 = vadd.f32 %v130, %v124
    %v132 = vadd.f32 %v131, %v125
    %v133 = vadd.f32 %v132, %v126
    %v134 = vadd.f32 %v133, %v127
    %v135 = vadd.f32 %v134, %v128
    %v136 = vadd.f32 %v135, %v129
    %137 = vadd.xlane.f32.xlu0 %v136
    %v138 = vpop.xlane.xlu0 %137
    %v139 = vld [vmem:[%s2] sm:$0xff]
    %vm140 = vcmp.eq.s32.totalorder %v139, %v27
    %v141 = vrsqrt.pop %v121
    %v142 = vmul.f32 %v141, %v121
    %v143 = vmul.f32 %v142, %v141
    %v144 = vmul.f32 0.5, %v143
    %v145 = vsub.f32 1.5, %v144
    %v146 = vmul.f32 %v141, %v145
    %v147 = vmul.f32 %v121, %v146
    %vm148 = vcmp.eq.f32.partialorder %v121, inf
    %v149 = vsel %vm148, %v121, %v147
    %vm150 = vcmp.eq.f32.partialorder %v121, 0.0
    %v151 = vand.u32 %v121, 2147483648
    %v152 = vsel %vm150, %v151, %v149
    %v153 = vmax.f32 %v152, 1e-08
    %v154 = vrsqrt.pop %v138
    %v155 = vmul.f32 %v154, %v138
    %v156 = vmul.f32 %v155, %v154
    %v157 = vmul.f32 0.5, %v156
    %v158 = vsub.f32 1.5, %v157
    %v159 = vmul.f32 %v154, %v158
    %v160 = vmul.f32 %v138, %v159
    %vm161 = vcmp.eq.f32.partialorder %v138, inf
    %v162 = vsel %vm161, %v138, %v160
    %vm163 = vcmp.eq.f32.partialorder %v138, 0.0
    %v164 = vand.u32 %v138, 2147483648
    %v165 = vsel %vm163, %v164, %v162
    %v166 = vmax.f32 %v165, 1e-08
    %v167 = vmul.f32 %v153, %v166
    %v168 = vrcp.pop %v167
    %v169 = vmul.f32 %v167, %v168
    %v170 = vsub.f32 1.0, %v169
    %v171 = vmul.f32 %v168, %v170
    %v172 = vadd.f32 %v168, %v171
    %vm173 = vweird.f32 %v167
    %vm174 = vweird.f32 %v168
    %vm175 = vmor %vm173, %vm174
    %v176 = vsel %vm175, %v168, %v172
    %v177 = vand.u32 2147483647, %v167
    %vm178 = vcmp.eq.f32.partialorder %v177, 8.507059e+37
    %v179 = vand.u32 %v167, 2147483648
    %v180 = vor.u32 1.1754944e-38, %v179
    %v181 = vsel %vm178, %v180, %v176
    %v182 = vmul.f32 %v104, %v181
    %v183 = vsub.f32 1.0, %v182
    %v184 = vmax.f32 %v182, 0.0
    %v185 = vsel %vm140, %v183, %v184
    %v186 = vsel %vm52, %v185, 0.0
    %187 = vadd.xlane.f32.xlu0 %v186
    %v188 = vpop.xlane.xlu0 %187
    %v189 = vrot.slane %v188, 4
    %v190 = vadd.f32 %v188, %v189
    %v191 = vrot.slane %v190, 2
    %v192 = vadd.f32 %v190, %v191
    %v193 = vrot.slane %v192, 1
    %v194 = vadd.f32 %v192, %v193
    %s195 = vtos %v194
    %v196 = vrcp.pop 8.0
    %v197 = vmul.f32 8.0, %v196
    %v198 = vsub.f32 1.0, %v197
    %v199 = vmul.f32 %v196, %v198
    %v200 = vadd.f32 %v196, %v199
    %vm201 = vweird.f32 %v196
    %v202 = vsel %vm201, %v196, %v200
    %s203 = vtos %v202
    %s204 = smul.f32 %s195, %s203
    %v205 = vld [vmem:[%s5] sm:$0xff]
    %v206 = vld [vmem:[%s6] sm:$0xff]
    %v207 = vsub.f32 %v205, %v206
    %v208 = vmul.f32 %v207, %v207
    %vm209 = vcmask 293888
    %v210 = vsel %vm209, %v208, 0.0
    %211 = vadd.xlane.f32.xlu0 %v210
    %v212 = vpop.xlane.xlu0 %211
    %v213 = vrot.slane %v212, 4
    %v214 = vadd.f32 %v212, %v213
    %v215 = vrot.slane %v214, 2
    %v216 = vadd.f32 %v214, %v215
    %v217 = vrot.slane %v216, 1
    %v218 = vadd.f32 %v216, %v217
    %s219 = vtos %v218
    %v220 = vrcp.pop 288.0
    %v221 = vmul.f32 288.0, %v220
    %v222 = vsub.f32 1.0, %v221
    %v223 = vmul.f32 %v220, %v222
    %v224 = vadd.f32 %v220, %v223
    %vm225 = vweird.f32 %v220
    %v226 = vsel %vm225, %v220, %v224
    %s227 = vtos %v226
    %s228 = smul.f32 %s219, %s227
    %s229 = smul.f32 %s204, 0.04
    %s230 = sadd.f32 %s71, %s229
    %s231 = smul.f32 %s228, 0.2
    %s232 = sadd.f32 %s230, %s231
    %v233 = vstv %s232
    %vm234 = vcmask 0
    %235 = vst.msk [vmem:[#allocation2] sm:$0x1] %vm234, %v233
    // Predicated region
    $region30: #{parameter_similarity_loss.1} parent=1 // pred_check
      _
    $region31: #{parameter_similarity_loss.1} parent=1 // pred_check_branch
      %237 = sbr.rel (0) target = $region33
    $region32: #{parameter_similarity_loss.1} parent=1 // pred_region
      %239 = vsyncadd [#allocation3], 0
      %s241 = sshll.u32 [#allocation2], 4
      %s242 = int_to_ptr.vmem [resolvable:$true] %s241
      %s243 = sshll.u32 %s7, 4
      %s244 = int_to_ptr.hbm [resolvable:$true] %s243
      %246 = dma.vmem_to_hbm [thread:$0]  %s242, 16, %s244, [#allocation3]
    $region33: #{parameter_similarity_loss.1} parent=1 // pred_fallthru
      _
    // Predicated region
    $region34: #{parameter_similarity_loss.1} parent=1 // pred_check
      _
    $region35: #{parameter_similarity_loss.1} parent=1 // pred_check_branch
      %248 = sbr.rel (0) target = $region37
    $region36: #{parameter_similarity_loss.1} parent=1 // pred_region
      %250 = dma.done [#allocation3], 16
    $region37: #{parameter_similarity_loss.1} parent=1 // pred_fallthru
      _
    %251 = vsyncpa [#allocation3], 1

</llo_original>
